<compile_context>
chip_gen: v6e
topology: v6e:2x2x1
jax: 0.10.0
libtpu: 0.0.40
codegen_flags: <defaults>
</compile_context>

<pallas_src>
import functools

import jax
import jax.numpy as jnp
from jax import lax
from jax.experimental import pallas as pl
from jax.experimental.pallas import tpu as pltpu


def _round_up(x: int, m: int) -> int:
    return ((x + m - 1) // m) * m


def _studentt_linear_kernel(x_ref, w_ref, b_ref, out_ref,
                            *, event_dim: int, min_scale: float, min_df: float):
    # MXU matmul on the (TM, H_in) x (H_in, Npad) tiles, f32 accumulation.
    y = jnp.dot(x_ref[...], w_ref[...], preferred_element_type=jnp.float32)
    y = y + b_ref[...].astype(jnp.float32)          # (TM, Npad) + (1, Npad)

    E = event_dim
    tm, npad = y.shape

    # Per-lane column index selects which activation each column gets.
    col = lax.broadcasted_iota(jnp.int32, (tm, npad), 1)
    sp = jax.nn.softplus(y)                          # EUP path; whole tile (memory-bound kernel)
    out = jnp.where(
        col < E,
        y,                                           # loc: raw affine output
        jnp.where(col < 2 * E,
                  jnp.maximum(sp, min_scale),        # scale
                  jnp.maximum(sp, min_df)),          # df (padded cols land here, sliced off later)
    )
    # Single wide (lane-dense) store; clamp done in f32 then a single cast.
    out_ref[...] = out.astype(out_ref.dtype)


def studentt_linear(x, weight, bias, *, event_dim: int,
                    min_scale: float = 1e-6, min_df: float = 2.0):
    """Pallas implementation of StudentTLinear.forward (fixed_df=None).

    Args:
      x:      (*, in_features)
      weight: (in_features, 3 * event_dim)   -- already transposed vs torch's (out, in)
      bias:   (3 * event_dim,)
    Returns:
      dict with "loc", "scale", "df", each of shape (*, event_dim).
    """
    in_features = x.shape[-1]
    lead_shape = x.shape[:-1]
    x2d = x.reshape((-1, in_features))
    B = x2d.shape[0]
    N = 3 * event_dim

    x_itemsize = jnp.dtype(x.dtype).itemsize
    w_itemsize = jnp.dtype(weight.dtype).itemsize

    # --- lane-dense output width: pad N (=3E) up to a multiple of 128 ----------
    Npad = _round_up(N, 128)
    if Npad != N:
        weight_p = jnp.pad(weight, ((0, 0), (0, Npad - N)))
        bias_p = jnp.pad(bias, (0, Npad - N))
    else:
        weight_p, bias_p = weight, bias
    b2d = bias_p.reshape((1, Npad))

    # --- batch-tile (TM) selection: biggest tile fitting a conservative VMEM budget
    # that is safe on v5e (16 MiB scoped default) / v6e / v7x (64 MiB physical).
    budget = 24 * 1024 * 1024
    resident = 2 * in_features * Npad * w_itemsize + 2 * Npad * w_itemsize  # W + bias (2-buffered worst case)
    per_row = 2 * in_features * x_itemsize + 2 * Npad * x_itemsize          # double-buffered x + out rows
    tm_max = max((budget - resident) // max(per_row, 1), 8)
    tm_max = max(8, min((int(tm_max) // 8) * 8, 1024))
    B8 = _round_up(max(B, 1), 8)
    TM = min(tm_max, B8)

    B_pad = _round_up(max(B, 1), TM)
    if B_pad != B:
        x2d = jnp.pad(x2d, ((0, B_pad - B), (0, 0)))

    grid = (B_pad // TM,)

    # Explicit scoped-VMEM request with headroom (double-buffered tiles + resident W).
    vmem_bytes = (2 * TM * in_features * x_itemsize       # x tiles
                  + 2 * in_features * Npad * w_itemsize   # weight
                  + 2 * Npad * w_itemsize                 # bias
                  + 2 * TM * Npad * x_itemsize            # output tiles
                  + 4 * 1024 * 1024)                      # headroom
    vmem_limit = int(max(vmem_bytes, 16 * 1024 * 1024))

    kernel = functools.partial(
        _studentt_linear_kernel,
        event_dim=event_dim, min_scale=min_scale, min_df=min_df,
    )

    cost = pl.CostEstimate(
        flops=2 * B_pad * in_features * Npad,
        transcendentals=B_pad * Npad,
        bytes_accessed=(B_pad * in_features * x_itemsize
                        + in_features * Npad * w_itemsize
                        + Npad * w_itemsize
                        + B_pad * Npad * x_itemsize),
    )

    y = pl.pallas_call(
        kernel,
        out_shape=jax.ShapeDtypeStruct((B_pad, Npad), x.dtype),
        grid=grid,
        in_specs=[
            pl.BlockSpec((TM, in_features), lambda i: (i, 0)),   # x: tiled over batch
            pl.BlockSpec((in_features, Npad), lambda i: (0, 0)),  # W: resident
            pl.BlockSpec((1, Npad), lambda i: (0, 0)),            # b: resident
        ],
        out_specs=pl.BlockSpec((TM, Npad), lambda i: (i, 0)),
        compiler_params=pltpu.CompilerParams(
            dimension_semantics=("parallel",),
            vmem_limit_bytes=vmem_limit,
        ),
        cost_estimate=cost,
    )(x2d, weight_p, b2d)

    y = y[:B]
    out_shape = lead_shape + (event_dim,)
    loc = y[:, :event_dim].reshape(out_shape)
    scale = y[:, event_dim:2 * event_dim].reshape(out_shape)
    df = y[:, 2 * event_dim:3 * event_dim].reshape(out_shape)
    # TODO(synk): fixed_df path (df = full_like(loc, fixed_df), 2-parameter head) is
    # trivial wrapper glue and not routed through the kernel.
    return {"loc": loc, "scale": scale, "df": df}


def _reference(x, weight, bias, *, event_dim, min_scale=1e-6, min_df=2.0):
    y = x @ weight + bias
    E = event_dim
    return {
        "loc": y[..., :E],
        "scale": jnp.maximum(jax.nn.softplus(y[..., E:2 * E]), min_scale),
        "df": jnp.maximum(jax.nn.softplus(y[..., 2 * E:3 * E]), min_df),
    }


if __name__ == "__main__":
    # Small shapes consistent with a Linear base layer: (*, H_in) input.
    batch, in_features, event_dim = 8, 32, 16
    out_features = 3 * event_dim  # fixed_df=None -> 3 params (loc, scale, df)

    key = jax.random.PRNGKey(0)
    kx, kw, kb, kx3 = jax.random.split(key, 4)

    x = jax.random.normal(kx, (batch, in_features), dtype=jnp.float32)

    # Deterministic PyTorch-nn.Linear-style init: U(-1/sqrt(in), 1/sqrt(in)).
    bound = 1.0 / (in_features ** 0.5)
    weight = jax.random.uniform(kw, (in_features, out_features),
                                minval=-bound, maxval=bound, dtype=jnp.float32)
    bias = jax.random.uniform(kb, (out_features,),
                              minval=-bound, maxval=bound, dtype=jnp.float32)

    out = studentt_linear(x, weight, bias, event_dim=event_dim,
                          min_scale=1e-6, min_df=2.0)
    jax.block_until_ready(out)

    ref = _reference(x, weight, bias, event_dim=event_dim)
    for k in ("loc", "scale", "df"):
        assert out[k].shape == (batch, event_dim), (k, out[k].shape)
        assert jnp.allclose(out[k], ref[k], atol=1e-5, rtol=1e-5), k

    # Also exercise arbitrary leading dims (*, H_in) like torch's Linear broadcasting.
    x3 = jax.random.normal(kx3, (2, 3, in_features), dtype=jnp.float32)
    out3 = studentt_linear(x3, weight, bias, event_dim=event_dim)
    jax.block_until_ready(out3)
    ref3 = _reference(x3, weight, bias, event_dim=event_dim)
    for k in ("loc", "scale", "df"):
        assert out3[k].shape == (2, 3, event_dim), (k, out3[k].shape)
        assert jnp.allclose(out3[k], ref3[k], atol=1e-5, rtol=1e-5), k

    print("KERNEL_OK")
</pallas_src>

<mosaic_0001>
module attributes {stable_mosaic.version = 11 : i64} {
  func.func @_studentt_linear_kernel(%arg0: i32, %arg1: memref<8x32xf32, #tpu.memory_space<vmem>>, %arg2: memref<32x128xf32, #tpu.memory_space<vmem>>, %arg3: memref<1x128xf32, #tpu.memory_space<vmem>>, %arg4: memref<8x128xf32, #tpu.memory_space<vmem>>) attributes {dimension_semantics = [#tpu.dimension_semantics<parallel>], iteration_bounds = array<i64: 1>, scalar_prefetch = 0 : i64, scratch_operands = 0 : i64, tpu.core_type = #tpu.core_type<tc>, window_params = [{transform_indices = @transform_0, window_bounds = array<i64: 8, 32>}, {pipeline_mode = #tpu.pipeline_mode<synchronous>, transform_indices = @transform_1, window_bounds = array<i64: 32, 128>}, {pipeline_mode = #tpu.pipeline_mode<synchronous>, transform_indices = @transform_2, window_bounds = array<i64: 1, 128>}, {transform_indices = @transform_3, window_bounds = array<i64: 8, 128>}]} {
    %c0 = arith.constant 0 : index
    %c0_0 = arith.constant 0 : index
    %0 = vector.load %arg1[%c0, %c0_0] : memref<8x32xf32, #tpu.memory_space<vmem>>, vector<8x32xf32>
    %c0_1 = arith.constant 0 : index
    %c0_2 = arith.constant 0 : index
    %1 = vector.load %arg2[%c0_1, %c0_2] : memref<32x128xf32, #tpu.memory_space<vmem>>, vector<32x128xf32>
    %cst = arith.constant dense<0.000000e+00> : vector<8x128xf32>
    %2 = tpu.matmul %0, %1, %cst {dimension_numbers = #tpu.dot_dimension_numbers<[1], [0], [0], [1], [0, 0, 1, 1], [], []>} : vector<8x32xf32>, vector<32x128xf32>, vector<8x128xf32> -> vector<8x128xf32>
    %c0_3 = arith.constant 0 : index
    %c0_4 = arith.constant 0 : index
    %3 = vector.load %arg3[%c0_3, %c0_4] : memref<1x128xf32, #tpu.memory_space<vmem>>, vector<1x128xf32>
    %4 = vector.broadcast %3 : vector<1x128xf32> to vector<8x128xf32>
    %5 = arith.addf %2, %4 : vector<8x128xf32>
    %6 = tpu.iota {dimensions = array<i32: 1>} : vector<8x128xi32>
    %cst_5 = arith.constant 0.000000e+00 : f32
    %7 = vector.broadcast %cst_5 : f32 to vector<8x128xf32>
    %8 = arith.maximumf %5, %7 : vector<8x128xf32>
    %9 = vector.broadcast %cst_5 : f32 to vector<8x128xf32>
    %10 = arith.subf %5, %9 : vector<8x128xf32>
    %11 = arith.cmpf one, %10, %10 : vector<8x128xf32>
    %12 = vector.broadcast %cst_5 : f32 to vector<8x128xf32>
    %13 = arith.addf %5, %12 : vector<8x128xf32>
    %14 = math.absf %10 : vector<8x128xf32>
    %cst_6 = arith.constant 0.000000e+00 : f32
    %15 = vector.broadcast %cst_6 : f32 to vector<8x128xf32>
    %16 = arith.subf %15, %14 : vector<8x128xf32>
    %17 = math.exp %16 : vector<8x128xf32>
    %18 = math.log1p %17 : vector<8x128xf32>
    %19 = arith.addf %8, %18 : vector<8x128xf32>
    %20 = arith.select %11, %13, %19 : vector<8x128xi1>, vector<8x128xf32>
    %c16_i32 = arith.constant 16 : i32
    %21 = vector.broadcast %c16_i32 : i32 to vector<8x128xi32>
    %22 = arith.cmpi slt, %6, %21 : vector<8x128xi32>
    %c32_i32 = arith.constant 32 : i32
    %23 = vector.broadcast %c32_i32 : i32 to vector<8x128xi32>
    %24 = arith.cmpi slt, %6, %23 : vector<8x128xi32>
    %cst_7 = arith.constant 9.99999997E-7 : f32
    %25 = vector.broadcast %cst_7 : f32 to vector<8x128xf32>
    %26 = arith.maximumf %20, %25 : vector<8x128xf32>
    %cst_8 = arith.constant 2.000000e+00 : f32
    %27 = vector.broadcast %cst_8 : f32 to vector<8x128xf32>
    %28 = arith.maximumf %20, %27 : vector<8x128xf32>
    %29 = arith.select %24, %26, %28 : vector<8x128xi1>, vector<8x128xf32>
    %30 = arith.select %22, %5, %29 : vector<8x128xi1>, vector<8x128xf32>
    %c0_9 = arith.constant 0 : index
    %c0_10 = arith.constant 0 : index
    %31 = vector.load %arg4[%c0_9, %c0_10] : memref<8x128xf32, #tpu.memory_space<vmem>>, vector<8x128xf32>
    tpu.vector_store %arg4[%c0_9, %c0_10], %30 {strides = array<i32>} : memref<8x128xf32, #tpu.memory_space<vmem>>, vector<8x128xf32>,
    return
  }
  func.func @transform_0(%arg0: i32) -> (i32, i32) {
    %c0_i32 = arith.constant 0 : i32
    %c0_i32_0 = arith.constant 0 : i32
    return %arg0, %c0_i32 : i32, i32
  }
  func.func @transform_1(%arg0: i32) -> (i32, i32) {
    %c0_i32 = arith.constant 0 : i32
    %c0_i32_0 = arith.constant 0 : i32
    %c0_i32_1 = arith.constant 0 : i32
    return %c0_i32, %c0_i32_0 : i32, i32
  }
  func.func @transform_2(%arg0: i32) -> (i32, i32) {
    %c0_i32 = arith.constant 0 : i32
    %c0_i32_0 = arith.constant 0 : i32
    %c0_i32_1 = arith.constant 0 : i32
    return %c0_i32, %c0_i32_0 : i32, i32
  }
  func.func @transform_3(%arg0: i32) -> (i32, i32) {
    %c0_i32 = arith.constant 0 : i32
    %c0_i32_0 = arith.constant 0 : i32
    return %arg0, %c0_i32 : i32, i32
  }
}

</mosaic_0001>

<llo_original>
// kernel: tpu_custom_call.1
$region0: #{tpu_custom_call.1}
  #allocation0 [shape = 'u32[]', space=smem, size = 0x4, offset = 0x4, fixed_abs, tag = 'smem constant byte address 0x4 - core index']
  #allocation1 [shape = 'u32[144,128]{1,0:T(1,128)}', space=vmem, size = 0x12000, scoped, tag = 'internal scratch']
  %s0 = inlined_call_operand.hbm [shape: f32[8,32], index: 0, kind: input, shape index: {}]
  %s1 = inlined_call_operand.hbm [shape: f32[32,128], index: 1, kind: input, shape index: {}]
  %s2 = inlined_call_operand.vmem [shape: f32[1,128], index: 2, kind: input, shape index: {}]
  %s3 = inlined_call_operand.hbm [shape: f32[8,128], index: 3, kind: output, shape index: {}]
  %s4 = sld [smem:[#allocation0]]
  $region30: #{tpu_custom_call.1} parent=0
    _
  %s6 = ssub.s32 1, %s4
  %s7 = scalar_select 0, %s6, %s4
  $region1: #{tpu_custom_call.1} parent=0
    #allocation2 [shape = 'u8[4096]{0}', space=vmem, size = 0x1000, scoped, tag = 'input window, operand 0, single buffered']
    #allocation3 [shape = 's32[1]{0}', space=sflag, size = 0x4, scoped, tag = 'scoped memory for tpu_custom_call.1']
    #allocation4 [shape = 's32[1]{0}', space=sflag, size = 0x4, scoped, tag = 'scoped memory for tpu_custom_call.1']
    #allocation5 [shape = 'u8[16384]{0}', space=vmem, size = 0x4000, scoped, tag = 'input window, operand 1, single buffered']
    #allocation6 [shape = 's32[1]{0}', space=sflag, size = 0x4, scoped, tag = 'scoped memory for tpu_custom_call.1']
    #allocation7 [shape = 'u8[4096]{0}', space=vmem, size = 0x1000, scoped, tag = 'output window, operand 0, single buffered']
    %8 = vsyncpa [#allocation3], 0
    %9 = vsyncpa [#allocation6], 0
    %10 = vsyncpa [#allocation4], 0
    // Predicated region
    $region2: #{tpu_custom_call.1} parent=1 // pred_check
      _
    $region3: #{tpu_custom_call.1} parent=1 // pred_check_branch
      %12 = sbr.rel (0) target = $region5
    $region4: #{tpu_custom_call.1} parent=1 // pred_region
      %s14 = ssub.s32 128, 128
      %15 = vsyncadd [#allocation3], %s14
      %s17 = sshll.u32 [#allocation2], 4
      %s18 = int_to_ptr.vmem [resolvable:$true] %s17
      %20 = dma.hbm_to_vmem [thread:$0]  %s0, 128, %s18, [#allocation3]
    $region5: #{tpu_custom_call.1} parent=1 // pred_fallthru
      _
    // Predicated region
    $region6: #{tpu_custom_call.1} parent=1 // pred_check
      _
    $region7: #{tpu_custom_call.1} parent=1 // pred_check_branch
      %22 = sbr.rel (0) target = $region9
    $region8: #{tpu_custom_call.1} parent=1 // pred_region
      %s24 = ssub.s32 512, 512
      %25 = vsyncadd [#allocation6], %s24
      %s26 = sshll.u32 [#allocation5], 4
      %s27 = int_to_ptr.vmem [resolvable:$true] %s26
      %32 = dma.hbm_to_vmem [thread:$0]  %s1, 512, %s27, [#allocation6], 128, 128, 8
    $region9: #{tpu_custom_call.1} parent=1 // pred_fallthru
      _
    // Predicated region
    $region10: #{tpu_custom_call.1} parent=1 // pred_check
      _
    $region11: #{tpu_custom_call.1} parent=1 // pred_check_branch
      %34 = sbr.rel (0) target = $region13
    $region12: #{tpu_custom_call.1} parent=1 // pred_region
      _
    $region13: #{tpu_custom_call.1} parent=1 // pred_fallthru
      _
    // Predicated region
    $region14: #{tpu_custom_call.1} parent=1 // pred_check
      _
    $region15: #{tpu_custom_call.1} parent=1 // pred_check_branch
      %36 = sbr.rel (0) target = $region17
    $region16: #{tpu_custom_call.1} parent=1 // pred_region
      %37 = dma.done [#allocation3], 128
    $region17: #{tpu_custom_call.1} parent=1 // pred_fallthru
      _
    // Predicated region
    $region18: #{tpu_custom_call.1} parent=1 // pred_check
      _
    $region19: #{tpu_custom_call.1} parent=1 // pred_check_branch
      %39 = sbr.rel (0) target = $region21
    $region20: #{tpu_custom_call.1} parent=1 // pred_region
      %40 = dma.done [#allocation6], 512
    $region21: #{tpu_custom_call.1} parent=1 // pred_fallthru
      _
    %v41 = vld [vmem:[#allocation2] sm:$0xff]
    %v42 = vld [vmem:[#allocation5] sm:$0xff]
    %v43 = vld [vmem:[#allocation5 + $0x8] sm:$0xff]
    %v44 = vld [vmem:[#allocation5 + $0x10] sm:$0xff]
    %v45 = vld [vmem:[#allocation5 + $0x18] sm:$0xff]
    %v46 = vld [vmem:[%s2] sm:$0x1]
    %v48 = vlaneseq
    %v49 = vshrl.u32 %v48, 7
    %v50 = vsub.s32 0, %v49
    %v51 = vrot.slane %v46, %v50
    %vm53 = vcmask 261120
    %v55 = vsel %vm53, %v41, 0
    %57 = vmatprep.subr.mxu0 0.0
    %58 = vmatpush1.msra.mxu0 0.0
    %59 = vmatprep.subr.mxu0 0.0
    %60 = vmatpush1.msra.mxu0 0.0
    %61 = vmatprep.subr.mxu0 0.0
    %62 = vmatpush1.msra.mxu0 0.0
    %63 = vmatprep.subr.mxu0 0.0
    %64 = vmatpush1.msra.mxu0 0.0
    %65 = vmatprep.subr.mxu0 0.0
    %66 = vmatpush1.msra.mxu0 0.0
    %67 = vmatprep.subr.mxu0 0.0
    %68 = vmatpush1.msra.mxu0 0.0
    %69 = vmatprep.subr.mxu0 0.0
    %70 = vmatpush1.msra.mxu0 0.0
    %71 = vmatprep.subr.mxu0 0.0
    %72 = vmatpush1.msra.mxu0 0.0
    %73 = vmatprep.subr.mxu0 0.0
    %74 = vmatpush1.msra.mxu0 0.0
    %75 = vmatprep.subr.mxu0 0.0
    %76 = vmatpush1.msra.mxu0 0.0
    %77 = vmatprep.subr.mxu0 0.0
    %78 = vmatpush1.msra.mxu0 0.0
    %79 = vmatprep.subr.mxu0 0.0
    %80 = vmatpush1.msra.mxu0 0.0
    %81 = vmatprep.subr.mxu0 0.0
    %82 = vmatpush1.msra.mxu0 %v45
    %83 = vmatprep.subr.mxu0 0.0
    %84 = vmatpush1.msra.mxu0 %v44
    %85 = vmatprep.subr.mxu0 0.0
    %86 = vmatpush1.msra.mxu0 %v43
    %87 = vmatprep.subr.mxu0 0.0
    %88 = vmatpush1.msra.mxu0 %v42
    %89 = vmatprep.subr.mxu0 0.0
    %90 = vmatpush2.msra.mxu0 0.0
    %91 = vmatprep.subr.mxu0 0.0
    %92 = vmatpush2.msra.mxu0 0.0
    %93 = vmatprep.subr.mxu0 0.0
    %94 = vmatpush2.msra.mxu0 0.0
    %95 = vmatprep.subr.mxu0 0.0
    %96 = vmatpush2.msra.mxu0 0.0
    %97 = vmatprep.subr.mxu0 0.0
    %98 = vmatpush2.msra.mxu0 0.0
    %99 = vmatprep.subr.mxu0 0.0
    %100 = vmatpush2.msra.mxu0 0.0
    %101 = vmatprep.subr.mxu0 0.0
    %102 = vmatpush2.msra.mxu0 0.0
    %103 = vmatprep.subr.mxu0 0.0
    %104 = vmatpush2.msra.mxu0 0.0
    %105 = vmatprep.subr.mxu0 0.0
    %106 = vmatpush2.msra.mxu0 0.0
    %107 = vmatprep.subr.mxu0 0.0
    %108 = vmatpush2.msra.mxu0 0.0
    %109 = vmatprep.subr.mxu0 0.0
    %110 = vmatpush2.msra.mxu0 0.0
    %111 = vmatprep.subr.mxu0 0.0
    %112 = vmatpush2.msra.mxu0 0.0
    %113 = vmatprep.subr.mxu0 0.0
    %114 = vmatpush2.msra.mxu0 0.0
    %115 = vmatprep.subr.mxu0 0.0
    %116 = vmatpush2.msra.mxu0 0.0
    %117 = vmatprep.subr.mxu0 0.0
    %118 = vmatpush2.msra.mxu0 0.0
    %119 = vmatprep.subr.mxu0 0.0
    %120 = vmatpush2.msra.mxu0 0.0
    %121 = vmatprep.mubr.f32.mxu0 0.0
    %122 = vmatmul.mubr.f32.gmra.mxu0 %v55
    %v123 = vpop.f32.mrf.mxu0
    %v124 = vadd.f32 %v51, %v123
    %v125 = vpop.f32.mrf.mxu0
    %126 = vdwg.mxu0
    %v127 = vlaneseq
    %v128 = vand.u32 %v127, 127
    %v129 = vmax.f32 %v124, 0.0
    %vm130 = vcmp.ne.f32.partialorder %v124, %v124
    %v131 = vadd.f32 %v124, 0.0
    %v132 = vand.u32 2147483647, %v124
    %v133 = vsub.f32 0.0, %v132
    %v134 = vmul.f32 %v133, 1.442695
    %v135 = vpow.pop %v134
    %v136 = vadd.f32 %v135, 1.0
    %v137 = vlog2.pop %v136
    %v138 = vmul.f32 %v137, 0.6931472
    %v139 = vmul.f32 -0.5, %v135
    %v140 = vadd.f32 %v139, 1.0
    %v141 = vmul.f32 %v140, %v135
    %v142 = vand.u32 2147483647, %v135
    %vm143 = vcmp.lt.f32.partialorder %v142, 0.0004427343
    %v144 = vsel %vm143, %v141, %v138
    %v145 = vadd.f32 %v129, %v144
    %v146 = vsel %vm130, %v131, %v145
    %vm147 = vcmp.lt.s32.totalorder %v128, 16
    %vm148 = vcmp.lt.s32.totalorder %v128, 32
    %v149 = vmax.f32 %v146, 1e-06
    %v150 = vmax.f32 %v146, 2.0
    %v151 = vsel %vm148, %v149, %v150
    %v152 = vsel %vm147, %v124, %v151
    %153 = vst [vmem:[#allocation7] sm:$0xff] %v152
    // Predicated region
    $region22: #{tpu_custom_call.1} parent=1 // pred_check
      _
    $region23: #{tpu_custom_call.1} parent=1 // pred_check_branch
      %155 = sbr.rel (0) target = $region25
    $region24: #{tpu_custom_call.1} parent=1 // pred_region
      %s157 = ssub.s32 128, 128
      %158 = vsyncadd [#allocation4], %s157
      %s160 = sshll.u32 [#allocation7], 4
      %s161 = int_to_ptr.vmem [resolvable:$true] %s160
      %163 = dma.vmem_to_hbm [thread:$0]  %s161, 128, %s3, [#allocation4]
    $region25: #{tpu_custom_call.1} parent=1 // pred_fallthru
      _
    // Predicated region
    $region26: #{tpu_custom_call.1} parent=1 // pred_check
      _
    $region27: #{tpu_custom_call.1} parent=1 // pred_check_branch
      %165 = sbr.rel (0) target = $region29
    $region28: #{tpu_custom_call.1} parent=1 // pred_region
      %166 = dma.done [#allocation4], 128
    $region29: #{tpu_custom_call.1} parent=1 // pred_fallthru
      _
    %167 = vsyncpa [#allocation3], 1
    %168 = vsyncpa [#allocation6], 1
    %169 = vsyncpa [#allocation4], 1

</llo_original>
